<compile_context>
chip_gen: v6e
topology: v6e:2x2x1
jax: 0.10.0
libtpu: 0.0.40
codegen_flags: <defaults>
</compile_context>

<pallas_src>
import functools

import jax
import jax.numpy as jnp
from jax.experimental import pallas as pl
from jax.experimental.pallas import tpu as pltpu


D_IN, H1, H2, D_OUT = 4, 10, 6, 3


def _round_up(n, m):
    return (n + m - 1) // m * m


def _cdiv(a, b):
    return (a + b - 1) // b


# Packed-weight slab geometry: each layer's (fan_out, fan_in) weight sits at an
# 8-sublane-aligned row offset; its bias occupies the last column of the slab.
_R1 = 0
_R2 = _round_up(H1, 8)               # 16
_R3 = _R2 + _round_up(H2, 8)         # 24
_ROWS = _R3 + _round_up(D_OUT, 8)    # 32
_BIAS_COL = max(D_IN, H1, H2)        # 10
_COLS = _BIAS_COL + 1                # 11

# Scoped-VMEM budget: large enough for 128K-lane tiles (x/out double buffers +
# in-kernel f32 intermediates), below v7x's 64 MiB physical VMEM per TC.
_VMEM_LIMIT_BYTES = 48 * 1024 * 1024


def pack_params(params):
    """Pack (w1,b1,w2,b2,w3,b3) [PyTorch shapes] into one (32, 11) f32 slab."""
    w1, b1, w2, b2, w3, b3 = params
    slab = jnp.zeros((_ROWS, _COLS), jnp.float32)
    slab = slab.at[_R1:_R1 + H1, :D_IN].set(w1.astype(jnp.float32))
    slab = slab.at[_R1:_R1 + H1, _BIAS_COL].set(b1.astype(jnp.float32))
    slab = slab.at[_R2:_R2 + H2, :H1].set(w2.astype(jnp.float32))
    slab = slab.at[_R2:_R2 + H2, _BIAS_COL].set(b2.astype(jnp.float32))
    slab = slab.at[_R3:_R3 + D_OUT, :H2].set(w3.astype(jnp.float32))
    slab = slab.at[_R3:_R3 + D_OUT, _BIAS_COL].set(b3.astype(jnp.float32))
    return slab


def mlp_kernel(w_ref, x_ref, o_ref):
    # x is (D_IN, TB): features on sublanes, batch on the 128-wide lane axis.
    # The whole MLP is lane-local (contraction only over the fully-valid
    # feature/sublane axis), so garbage lanes in a partial last block stay in
    # their own lanes and their OOB output writes are dropped by Pallas.
    x = x_ref[...]
    w = w_ref[...]                                   # resident (32, 11) slab

    w1 = w[_R1:_R1 + H1, :D_IN]                      # (10, 4)
    b1 = w[_R1:_R1 + H1, _BIAS_COL:_BIAS_COL + 1]    # (10, 1)
    w2 = w[_R2:_R2 + H2, :H1]                        # (6, 10)
    b2 = w[_R2:_R2 + H2, _BIAS_COL:_BIAS_COL + 1]    # (6, 1)
    w3 = w[_R3:_R3 + D_OUT, :H2]                     # (3, 6)
    b3 = w[_R3:_R3 + D_OUT, _BIAS_COL:_BIAS_COL + 1] # (3, 1)

    h1 = jnp.maximum(jnp.dot(w1, x, preferred_element_type=jnp.float32) + b1, 0.0)
    h2 = jnp.maximum(jnp.dot(w2, h1, preferred_element_type=jnp.float32) + b2, 0.0)
    out = jnp.dot(w3, h2, preferred_element_type=jnp.float32) + b3
    o_ref[...] = out.astype(o_ref.dtype)


def _pick_tile(batch, tb):
    """Lane tile: multiple of 128, <= tb, and >= 2 grid steps when batch > 128
    so the 'parallel' axis actually feeds both v7x TensorCores."""
    assert tb % 128 == 0 and tb >= 128, "tb must be a positive multiple of 128"
    if batch <= 128:
        return 128
    half = _round_up(_cdiv(batch, 2), 128)           # aim for >= 2 grid steps
    return max(128, min(tb, half))


@functools.partial(jax.jit, static_argnames=("tb",))
def mlp_forward_t(xt, params, *, tb=32768):
    """Copy-free entry point.

    xt: (D_IN, B) feature-major (batch on the lane axis). Returns (D_OUT, B).
    """
    d_in, B = xt.shape
    assert d_in == D_IN, xt.shape
    slab = pack_params(params)
    xt = xt.astype(jnp.float32)

    TB = _pick_tile(B, tb)
    grid = (_cdiv(B, TB),)                           # partial last block masked by Pallas

    return pl.pallas_call(
        mlp_kernel,
        out_shape=jax.ShapeDtypeStruct((D_OUT, B), jnp.float32),
        grid=grid,
        in_specs=[
            # Constant block index -> 16 KB weight slab DMA'd once, stays resident.
            pl.BlockSpec((_ROWS, _COLS), lambda i: (0, 0)),
            pl.BlockSpec((D_IN, TB), lambda i: (0, i)),
        ],
        out_specs=pl.BlockSpec((D_OUT, TB), lambda i: (0, i)),
        compiler_params=pltpu.CompilerParams(
            dimension_semantics=("parallel",),       # shards steps across v7x's 2 TCs
            vmem_limit_bytes=_VMEM_LIMIT_BYTES,
        ),
    )(slab, xt)


@functools.partial(jax.jit, static_argnames=("tb",))
def mlp_forward(x, params, *, tb=32768):
    """PyTorch-convention wrapper: x (B, D_IN) -> (B, D_OUT).

    The two transposes here are XLA-side layout plumbing; bandwidth-sensitive
    callers should use mlp_forward_t with feature-major data directly.
    """
    out_t = mlp_forward_t(x.T, params, tb=tb)        # (D_OUT, B)
    return out_t.T                                   # (B, D_OUT)


def init_params(key, input_features=D_IN, h1=H1, h2=H2, output_features=D_OUT):
    # PyTorch nn.Linear-style init and shapes: W (fan_out, fan_in), b (fan_out,)
    def linear(key, fan_in, fan_out):
        kw, kb = jax.random.split(key)
        bound = 1.0 / jnp.sqrt(fan_in)
        w = jax.random.uniform(kw, (fan_out, fan_in), jnp.float32, -bound, bound)
        b = jax.random.uniform(kb, (fan_out,), jnp.float32, -bound, bound)
        return w, b

    k1, k2, k3 = jax.random.split(key, 3)
    w1, b1 = linear(k1, input_features, h1)
    w2, b2 = linear(k2, h1, h2)
    w3, b3 = linear(k3, h2, output_features)
    return (w1, b1, w2, b2, w3, b3)


def reference_forward(x, params):
    w1, b1, w2, b2, w3, b3 = params
    h = jnp.maximum(x @ w1.T + b1, 0.0)
    h = jnp.maximum(h @ w2.T + b2, 0.0)
    return h @ w3.T + b3


if __name__ == "__main__":
    key = jax.random.PRNGKey(0)
    kx, kp, kx2 = jax.random.split(key, 3)
    params = init_params(kp)

    # Small case (PyTorch layout wrapper): single 128-lane tile, grid=(1,),
    # partial block masking on both input (8 valid lanes) and output.
    batch = 8
    x = jax.random.normal(kx, (batch, D_IN), jnp.float32)
    out = jax.block_until_ready(mlp_forward(x, params))
    ref = reference_forward(x, params)
    assert out.shape == (batch, D_OUT), out.shape
    assert jnp.allclose(out, ref, atol=1e-4, rtol=1e-4), jnp.max(jnp.abs(out - ref))

    # Ragged case via the copy-free feature-major entry point: 2 grid steps of
    # 256 lanes with a masked partial last block (no pad materialization).
    batch2 = 300
    x2 = jax.random.normal(kx2, (batch2, D_IN), jnp.float32)
    out2_t = jax.block_until_ready(mlp_forward_t(x2.T, params))
    ref2 = reference_forward(x2, params)
    assert out2_t.shape == (D_OUT, batch2), out2_t.shape
    assert jnp.allclose(out2_t.T, ref2, atol=1e-4, rtol=1e-4), jnp.max(
        jnp.abs(out2_t.T - ref2))

    print("KERNEL_OK")
</pallas_src>

<mosaic_0001>
module attributes {stable_mosaic.version = 11 : i64} {
  func.func @mlp_kernel(%arg0: i32, %arg1: memref<32x11xf32, #tpu.memory_space<vmem>>, %arg2: memref<4x128xf32, #tpu.memory_space<vmem>>, %arg3: memref<3x128xf32, #tpu.memory_space<vmem>>) attributes {dimension_semantics = [#tpu.dimension_semantics<parallel>], iteration_bounds = array<i64: 1>, scalar_prefetch = 0 : i64, scratch_operands = 0 : i64, tpu.core_type = #tpu.core_type<tc>, window_params = [{pipeline_mode = #tpu.pipeline_mode<synchronous>, transform_indices = @transform_0, window_bounds = array<i64: 32, 11>}, {transform_indices = @transform_1, window_bounds = array<i64: 4, 128>}, {transform_indices = @transform_2, window_bounds = array<i64: 3, 128>}]} {
    %c0 = arith.constant 0 : index
    %c0_0 = arith.constant 0 : index
    %0 = vector.load %arg2[%c0, %c0_0] : memref<4x128xf32, #tpu.memory_space<vmem>>, vector<4x128xf32>
    %c0_1 = arith.constant 0 : index
    %c0_2 = arith.constant 0 : index
    %1 = vector.load %arg1[%c0_1, %c0_2] : memref<32x11xf32, #tpu.memory_space<vmem>>, vector<32x11xf32>
    %2 = vector.extract_strided_slice %1 {offsets = [0, 0], sizes = [10, 4], strides = [1, 1]} : vector<32x11xf32> to vector<10x4xf32>
    %3 = vector.extract_strided_slice %1 {offsets = [0, 10], sizes = [10, 1], strides = [1, 1]} : vector<32x11xf32> to vector<10x1xf32>
    %4 = vector.extract_strided_slice %1 {offsets = [16, 0], sizes = [6, 10], strides = [1, 1]} : vector<32x11xf32> to vector<6x10xf32>
    %5 = vector.extract_strided_slice %1 {offsets = [16, 10], sizes = [6, 1], strides = [1, 1]} : vector<32x11xf32> to vector<6x1xf32>
    %6 = vector.extract_strided_slice %1 {offsets = [24, 0], sizes = [3, 6], strides = [1, 1]} : vector<32x11xf32> to vector<3x6xf32>
    %7 = vector.extract_strided_slice %1 {offsets = [24, 10], sizes = [3, 1], strides = [1, 1]} : vector<32x11xf32> to vector<3x1xf32>
    %cst = arith.constant dense<0.000000e+00> : vector<10x128xf32>
    %8 = tpu.matmul %2, %0, %cst {dimension_numbers = #tpu.dot_dimension_numbers<[1], [0], [0], [1], [0, 0, 1, 1], [], []>} : vector<10x4xf32>, vector<4x128xf32>, vector<10x128xf32> -> vector<10x128xf32>
    %9 = vector.broadcast %3 : vector<10x1xf32> to vector<10x128xf32>
    %10 = arith.addf %8, %9 : vector<10x128xf32>
    %cst_3 = arith.constant 0.000000e+00 : f32
    %11 = vector.broadcast %cst_3 : f32 to vector<10x128xf32>
    %12 = arith.maximumf %10, %11 : vector<10x128xf32>
    %cst_4 = arith.constant dense<0.000000e+00> : vector<6x128xf32>
    %13 = tpu.matmul %4, %12, %cst_4 {dimension_numbers = #tpu.dot_dimension_numbers<[1], [0], [0], [1], [0, 0, 1, 1], [], []>} : vector<6x10xf32>, vector<10x128xf32>, vector<6x128xf32> -> vector<6x128xf32>
    %14 = vector.broadcast %5 : vector<6x1xf32> to vector<6x128xf32>
    %15 = arith.addf %13, %14 : vector<6x128xf32>
    %cst_5 = arith.constant 0.000000e+00 : f32
    %16 = vector.broadcast %cst_5 : f32 to vector<6x128xf32>
    %17 = arith.maximumf %15, %16 : vector<6x128xf32>
    %cst_6 = arith.constant dense<0.000000e+00> : vector<3x128xf32>
    %18 = tpu.matmul %6, %17, %cst_6 {dimension_numbers = #tpu.dot_dimension_numbers<[1], [0], [0], [1], [0, 0, 1, 1], [], []>} : vector<3x6xf32>, vector<6x128xf32>, vector<3x128xf32> -> vector<3x128xf32>
    %19 = vector.broadcast %7 : vector<3x1xf32> to vector<3x128xf32>
    %20 = arith.addf %18, %19 : vector<3x128xf32>
    %c0_7 = arith.constant 0 : index
    %c0_8 = arith.constant 0 : index
    %21 = vector.load %arg3[%c0_7, %c0_8] : memref<3x128xf32, #tpu.memory_space<vmem>>, vector<3x128xf32>
    tpu.vector_store %arg3[%c0_7, %c0_8], %20 {strides = array<i32>} : memref<3x128xf32, #tpu.memory_space<vmem>>, vector<3x128xf32>,
    return
  }
  func.func @transform_0(%arg0: i32) -> (i32, i32) {
    %c0_i32 = arith.constant 0 : i32
    %c0_i32_0 = arith.constant 0 : i32
    %c0_i32_1 = arith.constant 0 : i32
    return %c0_i32, %c0_i32_0 : i32, i32
  }
  func.func @transform_1(%arg0: i32) -> (i32, i32) {
    %c0_i32 = arith.constant 0 : i32
    %c0_i32_0 = arith.constant 0 : i32
    return %c0_i32, %arg0 : i32, i32
  }
  func.func @transform_2(%arg0: i32) -> (i32, i32) {
    %c0_i32 = arith.constant 0 : i32
    %c0_i32_0 = arith.constant 0 : i32
    return %c0_i32, %arg0 : i32, i32
  }
}

</mosaic_0001>

<llo_original>
// kernel: mlp_forward_t.1
$region0: #{mlp_forward_t.1}
  #allocation0 [shape = 'u32[]', space=smem, size = 0x4, offset = 0x4, fixed_abs, tag = 'smem constant byte address 0x4 - core index']
  #allocation1 [shape = 'u32[144,128]{1,0:T(1,128)}', space=vmem, size = 0x12000, scoped, tag = 'internal scratch']
  %s0 = inlined_call_operand.vmem [shape: f32[32,11], index: 0, kind: input, shape index: {}]
  %s1 = inlined_call_operand.vmem [shape: f32[4,8], index: 1, kind: input, shape index: {}]
  %s2 = inlined_call_operand.hbm [shape: f32[3,8], index: 2, kind: output, shape index: {}]
  %s3 = sld [smem:[#allocation0]]
  $region18: #{mlp_forward_t.1} parent=0
    _
  %s5 = ssub.s32 1, %s3
  %s6 = scalar_select 0, %s5, %s3
  $region1: #{mlp_forward_t.1} parent=0
    #allocation2 [shape = 'u8[2048]{0}', space=vmem, size = 0x800, scoped, tag = 'output window, operand 0, single buffered']
    #allocation3 [shape = 's32[1]{0}', space=sflag, size = 0x4, scoped, tag = 'scoped memory for mlp_forward_t.1']
    %7 = vsyncpa [#allocation3], 0
    // Predicated region
    $region2: #{mlp_forward_t.1} parent=1 // pred_check
      _
    $region3: #{mlp_forward_t.1} parent=1 // pred_check_branch
      %9 = sbr.rel (0) target = $region5
    $region4: #{mlp_forward_t.1} parent=1 // pred_region
      _
    $region5: #{mlp_forward_t.1} parent=1 // pred_fallthru
      _
    // Predicated region
    $region6: #{mlp_forward_t.1} parent=1 // pred_check
      _
    $region7: #{mlp_forward_t.1} parent=1 // pred_check_branch
      %11 = sbr.rel (0) target = $region9
    $region8: #{mlp_forward_t.1} parent=1 // pred_region
      _
    $region9: #{mlp_forward_t.1} parent=1 // pred_fallthru
      _
    %v12 = vld [vmem:[%s1] sm:$0xf]
    %v13 = vld [vmem:[%s0] sm:$0xff]
    %v14 = vld [vmem:[%s0 + $0x8] sm:$0xff]
    %v15 = vld [vmem:[%s0 + $0x10] sm:$0xff]
    %v16 = vld [vmem:[%s0 + $0x18] sm:$0xff]
    %18 = vset.pattern.permute.xlu0 10
    %19 = vperm.xlu0 %18, %v13
    %v20 = vpop.permute.xlu0 %19
    %23 = vset.pattern.permute.xlu0 10
    %24 = vperm.xlu0 %23, %v14
    %v25 = vpop.permute.xlu0 %24
    %vm27 = vcmask 31744
    %v28 = vsel %vm27, %v13, 0
    %v30 = vsel %vm27, %v14, 0
    %vm32 = vcmask 1043456
    %v34 = vsel %vm32, %v12, 0
    %36 = vmatprep.subr.mxu0 0.0
    %37 = vmatpush1.msra.mxu0 0.0
    %38 = vmatprep.subr.mxu0 0.0
    %39 = vmatpush1.msra.mxu0 0.0
    %40 = vmatprep.subr.mxu0 0.0
    %41 = vmatpush1.msra.mxu0 0.0
    %42 = vmatprep.subr.mxu0 0.0
    %43 = vmatpush1.msra.mxu0 0.0
    %44 = vmatprep.subr.mxu0 0.0
    %45 = vmatpush1.msra.mxu0 0.0
    %46 = vmatprep.subr.mxu0 0.0
    %47 = vmatpush1.msra.mxu0 0.0
    %48 = vmatprep.subr.mxu0 0.0
    %49 = vmatpush1.msra.mxu0 0.0
    %50 = vmatprep.subr.mxu0 0.0
    %51 = vmatpush1.msra.mxu0 0.0
    %52 = vmatprep.subr.mxu0 0.0
    %53 = vmatpush1.msra.mxu0 0.0
    %54 = vmatprep.subr.mxu0 0.0
    %55 = vmatpush1.msra.mxu0 0.0
    %56 = vmatprep.subr.mxu0 0.0
    %57 = vmatpush1.msra.mxu0 0.0
    %58 = vmatprep.subr.mxu0 0.0
    %59 = vmatpush1.msra.mxu0 0.0
    %60 = vmatprep.subr.mxu0 0.0
    %61 = vmatpush1.msra.mxu0 0.0
    %62 = vmatprep.subr.mxu0 0.0
    %63 = vmatpush1.msra.mxu0 0.0
    %64 = vmatprep.subr.mxu0 0.0
    %65 = vmatpush1.msra.mxu0 0.0
    %66 = vmatprep.subr.mxu0 0.0
    %67 = vmatpush1.msra.mxu0 %v34
    %68 = vmatprep.subr.mxu0 0.0
    %69 = vmatpush2.msra.mxu0 0.0
    %70 = vmatprep.subr.mxu0 0.0
    %71 = vmatpush2.msra.mxu0 0.0
    %72 = vmatprep.subr.mxu0 0.0
    %73 = vmatpush2.msra.mxu0 0.0
    %74 = vmatprep.subr.mxu0 0.0
    %75 = vmatpush2.msra.mxu0 0.0
    %76 = vmatprep.subr.mxu0 0.0
    %77 = vmatpush2.msra.mxu0 0.0
    %78 = vmatprep.subr.mxu0 0.0
    %79 = vmatpush2.msra.mxu0 0.0
    %80 = vmatprep.subr.mxu0 0.0
    %81 = vmatpush2.msra.mxu0 0.0
    %82 = vmatprep.subr.mxu0 0.0
    %83 = vmatpush2.msra.mxu0 0.0
    %84 = vmatprep.subr.mxu0 0.0
    %85 = vmatpush2.msra.mxu0 0.0
    %86 = vmatprep.subr.mxu0 0.0
    %87 = vmatpush2.msra.mxu0 0.0
    %88 = vmatprep.subr.mxu0 0.0
    %89 = vmatpush2.msra.mxu0 0.0
    %90 = vmatprep.subr.mxu0 0.0
    %91 = vmatpush2.msra.mxu0 0.0
    %92 = vmatprep.subr.mxu0 0.0
    %93 = vmatpush2.msra.mxu0 0.0
    %94 = vmatprep.subr.mxu0 0.0
    %95 = vmatpush2.msra.mxu0 0.0
    %96 = vmatprep.subr.mxu0 0.0
    %97 = vmatpush2.msra.mxu0 0.0
    %98 = vmatprep.subr.mxu0 0.0
    %99 = vmatpush2.msra.mxu0 0.0
    %100 = vmatprep.mubr.f32.mxu0 0.0
    %101 = vmatmul.mubr.f32.gmra.mxu0 %v28
    %v102 = vpop.f32.mrf.mxu0
    %v103 = vadd.f32 %v20, %v102
    %v104 = vpop.f32.mrf.mxu0
    %105 = vmatprep.mubr.f32.mxu0 0.0
    %106 = vmatmul.mubr.f32.gmra.mxu0 %v30
    %v107 = vpop.f32.mrf.mxu0
    %v108 = vadd.f32 %v25, %v107
    %v109 = vpop.f32.mrf.mxu0
    %110 = vdwg.mxu0
    %v111 = vmax.f32 %v103, 0.0
    %v112 = vmax.f32 %v108, 0.0
    %114 = vset.pattern.permute.xlu0 10
    %115 = vperm.xlu0 %114, %v15
    %v116 = vpop.permute.xlu0 %115
    %vm118 = vcmask 80896
    %v119 = vsel %vm118, %v15, 0
    %vm121 = vcmask 1041408
    %v123 = vsel %vm121, %v112, 0
    %125 = vmatprep.subr.mxu0 0.0
    %126 = vmatpush1.msra.mxu0 0.0
    %127 = vmatprep.subr.mxu0 0.0
    %128 = vmatpush1.msra.mxu0 0.0
    %129 = vmatprep.subr.mxu0 0.0
    %130 = vmatpush1.msra.mxu0 0.0
    %131 = vmatprep.subr.mxu0 0.0
    %132 = vmatpush1.msra.mxu0 0.0
    %133 = vmatprep.subr.mxu0 0.0
    %134 = vmatpush1.msra.mxu0 0.0
    %135 = vmatprep.subr.mxu0 0.0
    %136 = vmatpush1.msra.mxu0 0.0
    %137 = vmatprep.subr.mxu0 0.0
    %138 = vmatpush1.msra.mxu0 0.0
    %139 = vmatprep.subr.mxu0 0.0
    %140 = vmatpush1.msra.mxu0 0.0
    %141 = vmatprep.subr.mxu0 0.0
    %142 = vmatpush1.msra.mxu0 0.0
    %143 = vmatprep.subr.mxu0 0.0
    %144 = vmatpush1.msra.mxu0 0.0
    %145 = vmatprep.subr.mxu0 0.0
    %146 = vmatpush1.msra.mxu0 0.0
    %147 = vmatprep.subr.mxu0 0.0
    %148 = vmatpush1.msra.mxu0 0.0
    %149 = vmatprep.subr.mxu0 0.0
    %150 = vmatpush1.msra.mxu0 0.0
    %151 = vmatprep.subr.mxu0 0.0
    %152 = vmatpush1.msra.mxu0 0.0
    %153 = vmatprep.subr.mxu0 0.0
    %154 = vmatpush1.msra.mxu0 %v123
    %155 = vmatprep.subr.mxu0 0.0
    %156 = vmatpush1.msra.mxu0 %v111
    %157 = vmatprep.subr.mxu0 0.0
    %158 = vmatpush2.msra.mxu0 0.0
    %159 = vmatprep.subr.mxu0 0.0
    %160 = vmatpush2.msra.mxu0 0.0
    %161 = vmatprep.subr.mxu0 0.0
    %162 = vmatpush2.msra.mxu0 0.0
    %163 = vmatprep.subr.mxu0 0.0
    %164 = vmatpush2.msra.mxu0 0.0
    %165 = vmatprep.subr.mxu0 0.0
    %166 = vmatpush2.msra.mxu0 0.0
    %167 = vmatprep.subr.mxu0 0.0
    %168 = vmatpush2.msra.mxu0 0.0
    %169 = vmatprep.subr.mxu0 0.0
    %170 = vmatpush2.msra.mxu0 0.0
    %171 = vmatprep.subr.mxu0 0.0
    %172 = vmatpush2.msra.mxu0 0.0
    %173 = vmatprep.subr.mxu0 0.0
    %174 = vmatpush2.msra.mxu0 0.0
    %175 = vmatprep.subr.mxu0 0.0
    %176 = vmatpush2.msra.mxu0 0.0
    %177 = vmatprep.subr.mxu0 0.0
    %178 = vmatpush2.msra.mxu0 0.0
    %179 = vmatprep.subr.mxu0 0.0
    %180 = vmatpush2.msra.mxu0 0.0
    %181 = vmatprep.subr.mxu0 0.0
    %182 = vmatpush2.msra.mxu0 0.0
    %183 = vmatprep.subr.mxu0 0.0
    %184 = vmatpush2.msra.mxu0 0.0
    %185 = vmatprep.subr.mxu0 0.0
    %186 = vmatpush2.msra.mxu0 0.0
    %187 = vmatprep.subr.mxu0 0.0
    %188 = vmatpush2.msra.mxu0 0.0
    %189 = vmatprep.mubr.f32.mxu0 0.0
    %190 = vmatmul.mubr.f32.gmra.mxu0 %v119
    %v191 = vpop.f32.mrf.mxu0
    %v192 = vadd.f32 %v116, %v191
    %v193 = vpop.f32.mrf.mxu0
    %194 = vdwg.mxu0
    %v195 = vmax.f32 %v192, 0.0
    %197 = vset.pattern.permute.xlu0 10
    %198 = vperm.xlu0 %197, %v16
    %v199 = vpop.permute.xlu0 %198
    %vm201 = vcmask 48128
    %v202 = vsel %vm201, %v16, 0
    %vm204 = vcmask 1045504
    %v206 = vsel %vm204, %v195, 0
    %208 = vmatprep.subr.mxu0 0.0
    %209 = vmatpush1.msra.mxu0 0.0
    %210 = vmatprep.subr.mxu0 0.0
    %211 = vmatpush1.msra.mxu0 0.0
    %212 = vmatprep.subr.mxu0 0.0
    %213 = vmatpush1.msra.mxu0 0.0
    %214 = vmatprep.subr.mxu0 0.0
    %215 = vmatpush1.msra.mxu0 0.0
    %216 = vmatprep.subr.mxu0 0.0
    %217 = vmatpush1.msra.mxu0 0.0
    %218 = vmatprep.subr.mxu0 0.0
    %219 = vmatpush1.msra.mxu0 0.0
    %220 = vmatprep.subr.mxu0 0.0
    %221 = vmatpush1.msra.mxu0 0.0
    %222 = vmatprep.subr.mxu0 0.0
    %223 = vmatpush1.msra.mxu0 0.0
    %224 = vmatprep.subr.mxu0 0.0
    %225 = vmatpush1.msra.mxu0 0.0
    %226 = vmatprep.subr.mxu0 0.0
    %227 = vmatpush1.msra.mxu0 0.0
    %228 = vmatprep.subr.mxu0 0.0
    %229 = vmatpush1.msra.mxu0 0.0
    %230 = vmatprep.subr.mxu0 0.0
    %231 = vmatpush1.msra.mxu0 0.0
    %232 = vmatprep.subr.mxu0 0.0
    %233 = vmatpush1.msra.mxu0 0.0
    %234 = vmatprep.subr.mxu0 0.0
    %235 = vmatpush1.msra.mxu0 0.0
    %236 = vmatprep.subr.mxu0 0.0
    %237 = vmatpush1.msra.mxu0 0.0
    %238 = vmatprep.subr.mxu0 0.0
    %239 = vmatpush1.msra.mxu0 %v206
    %240 = vmatprep.subr.mxu0 0.0
    %241 = vmatpush2.msra.mxu0 0.0
    %242 = vmatprep.subr.mxu0 0.0
    %243 = vmatpush2.msra.mxu0 0.0
    %244 = vmatprep.subr.mxu0 0.0
    %245 = vmatpush2.msra.mxu0 0.0
    %246 = vmatprep.subr.mxu0 0.0
    %247 = vmatpush2.msra.mxu0 0.0
    %248 = vmatprep.subr.mxu0 0.0
    %249 = vmatpush2.msra.mxu0 0.0
    %250 = vmatprep.subr.mxu0 0.0
    %251 = vmatpush2.msra.mxu0 0.0
    %252 = vmatprep.subr.mxu0 0.0
    %253 = vmatpush2.msra.mxu0 0.0
    %254 = vmatprep.subr.mxu0 0.0
    %255 = vmatpush2.msra.mxu0 0.0
    %256 = vmatprep.subr.mxu0 0.0
    %257 = vmatpush2.msra.mxu0 0.0
    %258 = vmatprep.subr.mxu0 0.0
    %259 = vmatpush2.msra.mxu0 0.0
    %260 = vmatprep.subr.mxu0 0.0
    %261 = vmatpush2.msra.mxu0 0.0
    %262 = vmatprep.subr.mxu0 0.0
    %263 = vmatpush2.msra.mxu0 0.0
    %264 = vmatprep.subr.mxu0 0.0
    %265 = vmatpush2.msra.mxu0 0.0
    %266 = vmatprep.subr.mxu0 0.0
    %267 = vmatpush2.msra.mxu0 0.0
    %268 = vmatprep.subr.mxu0 0.0
    %269 = vmatpush2.msra.mxu0 0.0
    %270 = vmatprep.subr.mxu0 0.0
    %271 = vmatpush2.msra.mxu0 0.0
    %272 = vmatprep.mubr.f32.mxu0 0.0
    %273 = vmatmul.mubr.f32.gmra.mxu0 %v202
    %v274 = vpop.f32.mrf.mxu0
    %v275 = vadd.f32 %v199, %v274
    %v276 = vpop.f32.mrf.mxu0
    %277 = vdwg.mxu0
    %278 = vst [vmem:[#allocation2] sm:$0x7] %v275
    // Predicated region
    $region10: #{mlp_forward_t.1} parent=1 // pred_check
      _
    $region11: #{mlp_forward_t.1} parent=1 // pred_check_branch
      %280 = sbr.rel (0) target = $region13
    $region12: #{mlp_forward_t.1} parent=1 // pred_region
      %s282 = ssub.s32 64, 64
      %283 = vsyncadd [#allocation3], %s282
      %s285 = sshll.u32 [#allocation2], 4
      %s286 = int_to_ptr.vmem [resolvable:$true] %s285
      %288 = dma.vmem_to_hbm [thread:$0]  %s286, 64, %s2, [#allocation3]
    $region13: #{mlp_forward_t.1} parent=1 // pred_fallthru
      _
    // Predicated region
    $region14: #{mlp_forward_t.1} parent=1 // pred_check
      _
    $region15: #{mlp_forward_t.1} parent=1 // pred_check_branch
      %290 = sbr.rel (0) target = $region17
    $region16: #{mlp_forward_t.1} parent=1 // pred_region
      %291 = dma.done [#allocation3], 64
    $region17: #{mlp_forward_t.1} parent=1 // pred_fallthru
      _
    %292 = vsyncpa [#allocation3], 1

</llo_original>
